<compile_context>
chip_gen: v7x
topology: tpu7x:2x2x1
jax: 0.10.0
libtpu: 0.0.40
codegen_flags: <defaults>
</compile_context>

<pallas_src>
import functools

import jax
import jax.numpy as jnp
from jax.experimental import pallas as pl
from jax.experimental.pallas import tpu as pltpu


_MAX_BLOCK_ROWS = 8192            # keeps per-step DMAs multi-MiB without bloating VMEM
_VMEM_HEADROOM = 4 * 1024 * 1024


@functools.lru_cache(maxsize=None)
def _physical_vmem_bytes():
    try:
        return int(pltpu.get_tpu_info().vmem_capacity_bytes)
    except Exception:
        # Conservative fallback (v7x-sized, 64 MiB) if the query is unavailable.
        return 64 * 1024 * 1024


def _vmem_limit_bytes():
    # 3/4 of physical VMEM: 48 MiB on v7x (64 MiB), 96 MiB on v5e/v6e (128 MiB).
    return (_physical_vmem_bytes() * 3) // 4


def _row_align(*dtypes):
    """Sublane packing: 8 rows for 4-byte dtypes, 16 for 2-byte, 32 for 1-byte."""
    align = 8
    for d in dtypes:
        align = max(align, 32 // max(1, jnp.dtype(d).itemsize))
    return align


def _choose_block_rows(batch, bytes_per_row, *, align, block_rows=None):
    """Row-tile size: a multiple of `align`, or exactly `batch` for tiny batches."""
    if batch <= align:
        return batch                                   # single full-array block
    budget = _vmem_limit_bytes() - _VMEM_HEADROOM
    # ~6x per-row bytes: double-buffered in/out DMA buffers + f32 intermediates.
    tb = budget // max(1, 6 * bytes_per_row)
    tb = min(tb, _MAX_BLOCK_ROWS)
    # Megacore (v7x) + DMA/compute overlap: big batches get >=2 (>=4) tiles.
    if batch >= 4096:
        tb = min(tb, -(-batch // 4))
    elif batch >= 4 * align:
        tb = min(tb, -(-batch // 2))
    if block_rows is not None:
        tb = min(tb, int(block_rows))
    tb = min(tb, batch)
    return max(align, (tb // align) * align)


def _make_ce_kernel(*, tb, k, total_b, onehot, mode):
    """mode: 'sum' | 'rows_packed' | 'rows_broadcast'."""

    def kernel(x_ref, t_ref, out_ref):
        x = x_ref[...].astype(jnp.float32)                                # (tb, K)

        # Numerically stable log-softmax along the class (lane) axis.
        m = jnp.max(x, axis=1, keepdims=True)                             # (tb, 1)
        shifted = x - m
        lse = jnp.log(jnp.sum(jnp.exp(shifted), axis=1, keepdims=True))   # (tb, 1)

        if onehot:
            lbl = t_ref[...]                                              # (tb, 1) int32
            cls = jax.lax.broadcasted_iota(jnp.int32, (tb, k), 1)         # (tb, K)
            x_at_lbl = jnp.sum(jnp.where(cls == lbl, shifted, 0.0),
                               axis=1, keepdims=True)                     # (tb, 1)
            per_row = lse - x_at_lbl                                      # -log_prob[lbl]
        else:
            t = t_ref[...].astype(jnp.float32)                            # (tb, K)
            per_row = -jnp.sum(t * (shifted - lse), axis=1, keepdims=True)

        # Mask rows past the true batch size (partial last tile reads garbage).
        row = (pl.program_id(0) * tb
               + jax.lax.broadcasted_iota(jnp.int32, (tb, 1), 0))
        per_row = jnp.where(row < total_b, per_row, 0.0)                  # (tb, 1)

        if mode == "sum":
            # One partial sum per tile; wrapper does the final mean over true B.
            out_ref[...] = jnp.broadcast_to(jnp.sum(per_row), (1, 1, 128))
        elif mode == "rows_packed":
            # Pack 128 per-row losses per output vreg row (4 B/row HBM writes).
            # Sublane->lane pack via broadcast + select + sublane reduction
            # (VPU/XLU work that hides under the DMAs; avoids shape_casts).
            eye = (jax.lax.broadcasted_iota(jnp.int32, (128, 128), 0)
                   == jax.lax.broadcasted_iota(jnp.int32, (128, 128), 1))
            for gi in range(tb // 128):                                   # static unroll
                chunk = per_row[gi * 128:(gi + 1) * 128, :]               # (128, 1)
                packed = jnp.sum(jnp.where(eye, chunk, 0.0),
                                 axis=0, keepdims=True)                   # (1, 128)
                out_ref[0, gi:gi + 1, :] = packed
        else:  # rows_broadcast (small-batch fallback)
            out_ref[...] = jnp.broadcast_to(per_row, (tb, 128))

    return kernel


def _ce_pallas_call(x, tgt, *, onehot, mode, tb):
    batch, k = x.shape
    grid = -(-batch // tb)  # ceil-div; partial last tile is masked in-kernel

    kernel = _make_ce_kernel(tb=tb, k=k, total_b=batch, onehot=onehot, mode=mode)

    if mode == "sum":
        out_shape = jax.ShapeDtypeStruct((grid, 1, 128), jnp.float32)
        out_spec = pl.BlockSpec((1, 1, 128), lambda i: (i, 0, 0))
    elif mode == "rows_packed":
        g = tb // 128
        out_shape = jax.ShapeDtypeStruct((grid, g, 128), jnp.float32)
        out_spec = pl.BlockSpec((1, g, 128), lambda i: (i, 0, 0))
    else:  # rows_broadcast
        out_shape = jax.ShapeDtypeStruct((grid * tb, 128), jnp.float32)
        out_spec = pl.BlockSpec((tb, 128), lambda i: (i, 0))

    in_specs = [
        pl.BlockSpec((tb, k), lambda i: (i, 0)),
        pl.BlockSpec((tb, tgt.shape[1]), lambda i: (i, 0)),
    ]

    return pl.pallas_call(
        kernel,
        out_shape=out_shape,
        grid_spec=pltpu.PrefetchScalarGridSpec(
            num_scalar_prefetch=0,
            grid=(grid,),
            in_specs=in_specs,
            out_specs=out_spec,
        ),
        compiler_params=pltpu.CompilerParams(
            dimension_semantics=("parallel",),          # independent tiles -> megacore
            vmem_limit_bytes=_vmem_limit_bytes(),
        ),
    )(x, tgt)


def _cross_entropy_impl(inputs, tgt, *, onehot, reduction, block_rows):
    batch, k = inputs.shape
    in_bytes = k * inputs.dtype.itemsize + (4 if onehot else k * tgt.dtype.itemsize)
    align = (_row_align(inputs.dtype) if onehot
             else _row_align(inputs.dtype, tgt.dtype))

    if reduction:
        tb = _choose_block_rows(batch, in_bytes + 8, align=align,
                                block_rows=block_rows)
        partials = _ce_pallas_call(inputs, tgt, onehot=onehot, mode="sum", tb=tb)
        return jnp.sum(partials[:, 0, 0]) / jnp.float32(batch)

    if batch >= 128 and (block_rows is None or block_rows % 128 == 0):
        # Lane-packed per-row losses: 128 rows per output vreg row.
        tb = _choose_block_rows(batch, in_bytes + 4, align=128,
                                block_rows=block_rows)
        packed = _ce_pallas_call(inputs, tgt, onehot=onehot,
                                 mode="rows_packed", tb=tb)
        return packed.reshape(-1)[:batch]

    # Small batches: lane-broadcast fallback (output traffic is negligible here).
    tb = _choose_block_rows(batch, in_bytes + 512, align=align,
                            block_rows=block_rows)
    rows = _ce_pallas_call(inputs, tgt, onehot=onehot,
                           mode="rows_broadcast", tb=tb)
    return rows[:batch, 0]


def cross_entropy1(inputs, targets, reduction=True, block_rows=None):
    """Pallas CrossEntropy1.forward with soft targets (matches the PyTorch module).

    inputs:  (B, K) logits
    targets: (B, K) soft target distribution
    """
    batch, k = inputs.shape
    assert targets.shape == (batch, k)
    return _cross_entropy_impl(inputs, targets, onehot=False,
                               reduction=reduction, block_rows=block_rows)


def cross_entropy1_from_labels(inputs, labels, reduction=True, block_rows=None):
    """One-hot fast path: integer labels (B,) instead of a (B, K) targets tensor.

    Numerically identical to cross_entropy1(inputs, one_hot(labels, K)) but streams
    ~half the bytes from HBM (the kernel is memory-bound).
    """
    batch, _ = inputs.shape
    labels2d = labels.astype(jnp.int32).reshape(batch, 1)
    return _cross_entropy_impl(inputs, labels2d, onehot=True,
                               reduction=reduction, block_rows=block_rows)


if __name__ == "__main__":
    num_classes = 65

    key = jax.random.PRNGKey(0)
    k_logits, k_labels, k_big, k_tgt = jax.random.split(key, 4)

    # --- 1-3) small batch (broadcast fallback paths), soft + one-hot ---
    batch = 8
    logits = jax.random.normal(k_logits, (batch, num_classes), dtype=jnp.float32)
    labels = jax.random.randint(k_labels, (batch,), 0, num_classes)
    targets = jax.nn.one_hot(labels, num_classes, dtype=jnp.float32)

    log_probs_ref = jax.nn.log_softmax(logits, axis=1)
    per_row_ref = jnp.sum(-targets * log_probs_ref, axis=1)
    loss_ref = jnp.mean(per_row_ref)

    loss = jax.block_until_ready(cross_entropy1(logits, targets, reduction=True))
    assert jnp.allclose(loss, loss_ref, atol=1e-5, rtol=1e-5), (loss, loss_ref)

    rows = jax.block_until_ready(cross_entropy1(logits, targets, reduction=False))
    assert jnp.allclose(rows, per_row_ref, atol=1e-5, rtol=1e-5), (rows, per_row_ref)

    loss_lbl = jax.block_until_ready(cross_entropy1_from_labels(logits, labels))
    assert jnp.allclose(loss_lbl, loss_ref, atol=1e-5, rtol=1e-5), (loss_lbl, loss_ref)

    # --- 4) multi-tile + padded tail (B=20 with an 8-row tile, mean reduction) ---
    b2 = 20
    logits2 = jax.random.normal(jax.random.PRNGKey(1), (b2, num_classes), jnp.float32)
    targets2 = jax.nn.softmax(
        jax.random.normal(jax.random.PRNGKey(2), (b2, num_classes), jnp.float32), axis=1)
    ref2 = jnp.mean(jnp.sum(-targets2 * jax.nn.log_softmax(logits2, axis=1), axis=1))
    loss2 = jax.block_until_ready(
        cross_entropy1(logits2, targets2, reduction=True, block_rows=8))
    assert jnp.allclose(loss2, ref2, atol=1e-5, rtol=1e-5), (loss2, ref2)

    # --- 5) lane-packed unreduced path: multi-tile, multi-chunk, masked tail ---
    b3 = 640                       # -> tb=256 (2+ parallel tiles), grid=3, tail masked
    logits3 = jax.random.normal(k_big, (b3, num_classes), dtype=jnp.float32)
    labels3 = jax.random.randint(jax.random.PRNGKey(3), (b3,), 0, num_classes)
    targets3 = jax.nn.softmax(
        jax.random.normal(k_tgt, (b3, num_classes), jnp.float32), axis=1)
    per_row_ref3 = jnp.sum(-targets3 * jax.nn.log_softmax(logits3, axis=1), axis=1)

    rows3 = jax.block_until_ready(cross_entropy1(logits3, targets3, reduction=False))
    assert rows3.shape == (b3,)
    assert jnp.allclose(rows3, per_row_ref3, atol=1e-5, rtol=1e-5)

    loss3 = jax.block_until_ready(cross_entropy1(logits3, targets3, reduction=True))
    assert jnp.allclose(loss3, jnp.mean(per_row_ref3), atol=1e-5, rtol=1e-5)

    rows3_lbl = jax.block_until_ready(
        cross_entropy1_from_labels(logits3, labels3, reduction=False))
    ref3_lbl = jnp.sum(-jax.nn.one_hot(labels3, num_classes, dtype=jnp.float32)
                       * jax.nn.log_softmax(logits3, axis=1), axis=1)
    assert jnp.allclose(rows3_lbl, ref3_lbl, atol=1e-5, rtol=1e-5)

    print("KERNEL_OK")
</pallas_src>

<mosaic_0001>
module attributes {stable_mosaic.version = 11 : i64} {
  func.func @kernel(%arg0: i32, %arg1: memref<8x65xf32, #tpu.memory_space<vmem>>, %arg2: memref<8x65xf32, #tpu.memory_space<vmem>>, %arg3: memref<1x1x128xf32, #tpu.memory_space<vmem>>) attributes {dimension_semantics = [#tpu.dimension_semantics<parallel>], iteration_bounds = array<i64: 1>, scalar_prefetch = 0 : i64, scratch_operands = 0 : i64, tpu.core_type = #tpu.core_type<tc>, window_params = [{transform_indices = @transform_0, window_bounds = array<i64: 8, 65>}, {transform_indices = @transform_1, window_bounds = array<i64: 8, 65>}, {transform_indices = @transform_2, window_bounds = array<i64: 1, 1, 128>}]} {
    %c0 = arith.constant 0 : index
    %c0_0 = arith.constant 0 : index
    %0 = vector.load %arg1[%c0, %c0_0] : memref<8x65xf32, #tpu.memory_space<vmem>>, vector<8x65xf32>
    %cst = arith.constant dense<0xFF800000> : vector<8xf32>
    %1 = vector.multi_reduction <maximumf>, %0, %cst [1] : vector<8x65xf32> to vector<8xf32>
    %2 = vector.shape_cast %1 : vector<8xf32> to vector<8x1xf32>
    %3 = vector.broadcast %2 : vector<8x1xf32> to vector<8x65xf32>
    %4 = arith.subf %0, %3 : vector<8x65xf32>
    %5 = math.exp %4 : vector<8x65xf32>
    %cst_1 = arith.constant dense<0.000000e+00> : vector<8xf32>
    %6 = vector.multi_reduction <add>, %5, %cst_1 [1] : vector<8x65xf32> to vector<8xf32>
    %7 = vector.shape_cast %6 : vector<8xf32> to vector<8x1xf32>
    %8 = math.log %7 : vector<8x1xf32>
    %c0_2 = arith.constant 0 : index
    %c0_3 = arith.constant 0 : index
    %9 = vector.load %arg2[%c0_2, %c0_3] : memref<8x65xf32, #tpu.memory_space<vmem>>, vector<8x65xf32>
    %10 = vector.broadcast %8 : vector<8x1xf32> to vector<8x65xf32>
    %11 = arith.subf %4, %10 : vector<8x65xf32>
    %12 = arith.mulf %9, %11 : vector<8x65xf32>
    %cst_4 = arith.constant dense<0.000000e+00> : vector<8xf32>
    %13 = vector.multi_reduction <add>, %12, %cst_4 [1] : vector<8x65xf32> to vector<8xf32>
    %14 = vector.shape_cast %13 : vector<8xf32> to vector<8x1xf32>
    %cst_5 = arith.constant 0.000000e+00 : f32
    %15 = vector.broadcast %cst_5 : f32 to vector<8x1xf32>
    %16 = arith.subf %15, %14 : vector<8x1xf32>
    %c8_i32 = arith.constant 8 : i32
    %17 = arith.muli %arg0, %c8_i32 : i32
    %18 = tpu.iota {dimensions = array<i32: 0>} : vector<8x1xi32>
    %19 = vector.broadcast %17 : i32 to vector<8x1xi32>
    %20 = arith.addi %19, %18 : vector<8x1xi32>
    %c8_i32_6 = arith.constant 8 : i32
    %21 = vector.broadcast %c8_i32_6 : i32 to vector<8x1xi32>
    %22 = arith.cmpi slt, %20, %21 : vector<8x1xi32>
    %cst_7 = arith.constant 0.000000e+00 : f32
    %23 = vector.broadcast %cst_7 : f32 to vector<8x1xf32>
    %24 = arith.select %22, %16, %23 : vector<8x1xi1>, vector<8x1xf32>
    %25 = vector.shape_cast %24 : vector<8x1xf32> to vector<1x8x1xf32>
    %cst_8 = arith.constant dense<0.000000e+00> : vector<1xf32>
    %26 = vector.multi_reduction <add>, %25, %cst_8 [1, 2] : vector<1x8x1xf32> to vector<1xf32>
    %27 = vector.shape_cast %26 : vector<1xf32> to vector<1x1x1xf32>
    %28 = vector.extract %27[0, 0, 0] : f32 from vector<1x1x1xf32>
    %29 = vector.broadcast %28 : f32 to vector<1x1x128xf32>
    %c0_9 = arith.constant 0 : index
    %c0_10 = arith.constant 0 : index
    %c0_11 = arith.constant 0 : index
    %30 = vector.load %arg3[%c0_9, %c0_10, %c0_11] : memref<1x1x128xf32, #tpu.memory_space<vmem>>, vector<1x1x128xf32>
    tpu.vector_store %arg3[%c0_9, %c0_10, %c0_11], %29 {strides = array<i32>} : memref<1x1x128xf32, #tpu.memory_space<vmem>>, vector<1x1x128xf32>,
    return
  }
  func.func @transform_0(%arg0: i32) -> (i32, i32) {
    %c0_i32 = arith.constant 0 : i32
    %c0_i32_0 = arith.constant 0 : i32
    return %arg0, %c0_i32 : i32, i32
  }
  func.func @transform_1(%arg0: i32) -> (i32, i32) {
    %c0_i32 = arith.constant 0 : i32
    %c0_i32_0 = arith.constant 0 : i32
    return %arg0, %c0_i32 : i32, i32
  }
  func.func @transform_2(%arg0: i32) -> (i32, i32, i32) {
    %c0_i32 = arith.constant 0 : i32
    %c0_i32_0 = arith.constant 0 : i32
    %c0_i32_1 = arith.constant 0 : i32
    return %arg0, %c0_i32, %c0_i32_0 : i32, i32, i32
  }
}

</mosaic_0001>

<llo_original>
// kernel: tpu_custom_call.1
$region0: #{tpu_custom_call.1}
  #allocation0 [shape = 'u32[]', space=smem, size = 0x4, offset = 0x4, fixed_abs, tag = 'smem constant byte address 0x4 - core index']
  #allocation1 [shape = 'u32[144,128]{1,0:T(1,128)}', space=vmem, size = 0x12000, scoped, tag = 'internal scratch']
  %s0 = inlined_call_operand.hbm [shape: f32[8,65], index: 0, kind: input, shape index: {}]
  %s1 = inlined_call_operand.hbm [shape: f32[8,65], index: 1, kind: input, shape index: {}]
  %s2 = inlined_call_operand.hbm [shape: f32[1,1,128], index: 2, kind: output, shape index: {}]
  %s3 = sld [smem:[#allocation0]]
  $region26: #{tpu_custom_call.1} parent=0
    _
  %s5 = ssub.s32 1, %s3
  %s6 = scalar_select 0, %s5, %s3
  $region1: #{tpu_custom_call.1} parent=0
    #allocation2 [shape = 'u8[4096]{0}', space=vmem, size = 0x1000, scoped, tag = 'input window, operand 0, single buffered']
    #allocation3 [shape = 's32[1]{0}', space=sflag, size = 0x4, scoped, tag = 'scoped memory for tpu_custom_call.1']
    #allocation4 [shape = 's32[1]{0}', space=sflag, size = 0x4, scoped, tag = 'scoped memory for tpu_custom_call.1']
    #allocation5 [shape = 'u8[4096]{0}', space=vmem, size = 0x1000, scoped, tag = 'input window, operand 1, single buffered']
    #allocation6 [shape = 's32[1]{0}', space=sflag, size = 0x4, scoped, tag = 'scoped memory for tpu_custom_call.1']
    #allocation7 [shape = 'u8[512]{0}', space=vmem, size = 0x400, scoped, tag = 'output window, operand 0, single buffered']
    %7 = vsyncpa [#allocation3], 0
    %8 = vsyncpa [#allocation6], 0
    %9 = vsyncpa [#allocation4], 0
    // Predicated region
    $region2: #{tpu_custom_call.1} parent=1 // pred_check
      _
    $region3: #{tpu_custom_call.1} parent=1 // pred_check_branch
      %11 = sbr.rel (0) target = $region5
    $region4: #{tpu_custom_call.1} parent=1 // pred_region
      %s13 = ssub.s32 128, 128
      %14 = vsyncadd [#allocation3], %s13
      %s16 = sshll.u32 [#allocation2], 4
      %s17 = int_to_ptr.vmem [resolvable:$true] %s16
      %19 = dma.hbm_to_vmem [thread:$0]  %s0, 128, %s17, [#allocation3]
    $region5: #{tpu_custom_call.1} parent=1 // pred_fallthru
      _
    // Predicated region
    $region6: #{tpu_custom_call.1} parent=1 // pred_check
      _
    $region7: #{tpu_custom_call.1} parent=1 // pred_check_branch
      %21 = sbr.rel (0) target = $region9
    $region8: #{tpu_custom_call.1} parent=1 // pred_region
      %s23 = ssub.s32 128, 128
      %24 = vsyncadd [#allocation6], %s23
      %s26 = sshll.u32 [#allocation5], 4
      %s27 = int_to_ptr.vmem [resolvable:$true] %s26
      %29 = dma.hbm_to_vmem [thread:$0]  %s1, 128, %s27, [#allocation6]
    $region9: #{tpu_custom_call.1} parent=1 // pred_fallthru
      _
    // Predicated region
    $region10: #{tpu_custom_call.1} parent=1 // pred_check
      _
    $region11: #{tpu_custom_call.1} parent=1 // pred_check_branch
      %31 = sbr.rel (0) target = $region13
    $region12: #{tpu_custom_call.1} parent=1 // pred_region
      %32 = dma.done [#allocation3], 128
    $region13: #{tpu_custom_call.1} parent=1 // pred_fallthru
      _
    // Predicated region
    $region14: #{tpu_custom_call.1} parent=1 // pred_check
      _
    $region15: #{tpu_custom_call.1} parent=1 // pred_check_branch
      %34 = sbr.rel (0) target = $region17
    $region16: #{tpu_custom_call.1} parent=1 // pred_region
      %35 = dma.done [#allocation6], 128
    $region17: #{tpu_custom_call.1} parent=1 // pred_fallthru
      _
    %v36 = vld [vmem:[#allocation2] sm:$0xff]
    %vm37 = vcmask 531456
    %v38 = vsel %vm37, %v36, -inf
    %39 = vmax.xlane.f32.xlu0 %v38
    %v40 = vpop.xlane.xlu0 %39
    %v41 = vsub.f32 %v36, %v40
    %v42 = vmul.f32 %v41, 1.442695
    %v43 = vpow.pop %v42
    %v44 = vsel %vm37, %v43, 0.0
    %45 = vadd.xlane.f32.xlu0 %v44
    %v46 = vpop.xlane.xlu0 %45
    %v47 = vlog2.pop %v46
    %v48 = vmul.f32 %v47, 0.6931472
    %v49 = vld [vmem:[#allocation5] sm:$0xff]
    %v50 = vsub.f32 %v41, %v48
    %v51 = vmul.f32 %v49, %v50
    %v52 = vsel %vm37, %v51, 0.0
    %53 = vadd.xlane.f32.xlu0 %v52
    %v54 = vpop.xlane.xlu0 %53
    %v55 = vsub.f32 0.0, %v54
    %s56 = smul.u32 0, 8
    %v57 = vlaneseq
    %v58 = vshrl.u32 %v57, 7
    %v59 = vstv %s56
    %v60 = vadd.s32 %v59, %v58
    %vm61 = vcmp.lt.s32.totalorder %v60, 8
    %v62 = vsel %vm61, %v55, 0.0
    %vm63 = vcmask 7168
    %v64 = vsel %vm63, %v62, 0.0
    %65 = vadd.xlane.f32.xlu0 %v64
    %v66 = vpop.xlane.xlu0 %65
    %v67 = vrot.slane %v66, 4
    %v68 = vadd.f32 %v66, %v67
    %v69 = vrot.slane %v68, 2
    %v70 = vadd.f32 %v68, %v69
    %v71 = vrot.slane %v70, 1
    %v72 = vadd.f32 %v70, %v71
    %s73 = vtos %v72
    %v74 = vstv %s73
    %75 = vst [vmem:[#allocation7] sm:$0x1] %v74
    // Predicated region
    $region18: #{tpu_custom_call.1} parent=1 // pred_check
      _
    $region19: #{tpu_custom_call.1} parent=1 // pred_check_branch
      %77 = sbr.rel (0) target = $region21
    $region20: #{tpu_custom_call.1} parent=1 // pred_region
      %s79 = ssub.s32 16, 16
      %80 = vsyncadd [#allocation4], %s79
      %s82 = sshll.u32 [#allocation7], 4
      %s83 = int_to_ptr.vmem [resolvable:$true] %s82
      %85 = dma.vmem_to_hbm [thread:$0]  %s83, 16, %s2, [#allocation4]
    $region21: #{tpu_custom_call.1} parent=1 // pred_fallthru
      _
    // Predicated region
    $region22: #{tpu_custom_call.1} parent=1 // pred_check
      _
    $region23: #{tpu_custom_call.1} parent=1 // pred_check_branch
      %87 = sbr.rel (0) target = $region25
    $region24: #{tpu_custom_call.1} parent=1 // pred_region
      %88 = dma.done [#allocation4], 16
    $region25: #{tpu_custom_call.1} parent=1 // pred_fallthru
      _
    %89 = vsyncpa [#allocation3], 1
    %90 = vsyncpa [#allocation6], 1
    %91 = vsyncpa [#allocation4], 1

</llo_original>
